<compile_context>
chip_gen: v7x
topology: tpu7x:2x2x1
jax: 0.10.0
libtpu: 0.0.40
codegen_flags: <defaults>
</compile_context>

<pallas_src>
import jax
import jax.numpy as jnp
from jax import lax
from jax.experimental import pallas as pl
from jax.experimental.pallas import tpu as pltpu


def _normalize_linear_kernel(x_ref, w_ref, b_ref, o_ref):
    x = x_ref[...]                                            # (TILE_N, E), input dtype
    xf = x.astype(jnp.float32)
    # F.normalize default: p=2, dim=1, eps=1e-12  ->  clamp sum-of-squares at eps^2
    sumsq = jnp.sum(xf * xf, axis=-1, keepdims=True)          # (TILE_N, 1) f32
    inv_norm = lax.rsqrt(jnp.maximum(sumsq, 1e-24))           # EUP rsqrt, no divide
    xn = (xf * inv_norm).astype(x.dtype)                      # back to MXU-native dtype
    # nn.Linear: y = xn @ W.T  == contract xn dim 1 with W dim 1 (no explicit .T)
    y = lax.dot_general(
        xn, w_ref[...],
        dimension_numbers=(((1,), (1,)), ((), ())),
        preferred_element_type=jnp.float32,
    )                                                          # (TILE_N, E) f32 acc
    y = y + b_ref[...].astype(jnp.float32)                     # bias broadcast in f32
    o_ref[...] = y.astype(o_ref.dtype)


def neural_network_forward(x, weight, bias, tile_n=1024):
    """x: (N, E), weight: (E, E), bias: (E,) -> (N, E).

    Tiles over the batch dimension N; weight and bias stay resident in VMEM
    across the whole grid (their index_map always returns block (0, 0)).
    """
    N, E = x.shape
    bias2d = bias.reshape(1, E)

    if N <= tile_n:
        tile_n = N                            # single full block (full-dim rule)
    else:
        tile_n = max(8, (tile_n // 8) * 8)    # sublane-aligned tile

    grid_n = pl.cdiv(N, tile_n)

    return pl.pallas_call(
        _normalize_linear_kernel,
        out_shape=jax.ShapeDtypeStruct((N, E), x.dtype),
        grid_spec=pltpu.PrefetchScalarGridSpec(
            num_scalar_prefetch=0,
            grid=(grid_n,),
            in_specs=[
                pl.BlockSpec((tile_n, E), lambda i: (i, 0)),   # x: tiled over N
                pl.BlockSpec((E, E), lambda i: (0, 0)),        # W: VMEM-resident
                pl.BlockSpec((1, E), lambda i: (0, 0)),        # b: VMEM-resident
            ],
            out_specs=pl.BlockSpec((tile_n, E), lambda i: (i, 0)),
        ),
        compiler_params=pltpu.CompilerParams(
            dimension_semantics=("parallel",),                 # shard across TCs on v7x
        ),
    )(x, weight, bias2d)


if __name__ == "__main__":
    embbed_size = 32
    batch = 8

    key = jax.random.PRNGKey(0)
    kx, kb = jax.random.split(key)

    # Deterministic parameter init mirroring the module's __init__:
    #   weight <- identity (torch.nn.init.eye_)
    #   bias   <- deterministic small uniform (nn.Linear default bias init range)
    weight = jnp.eye(embbed_size, dtype=jnp.float32)
    bound = 1.0 / jnp.sqrt(embbed_size)
    bias = jax.random.uniform(kb, (embbed_size,), jnp.float32,
                              minval=-bound, maxval=bound)

    x = jax.random.normal(kx, (batch, embbed_size), jnp.float32)

    out = neural_network_forward(x, weight, bias)
    out = jax.block_until_ready(out)

    # Reference check in plain JAX (matches F.normalize + Linear semantics)
    norm = jnp.maximum(jnp.sqrt(jnp.sum(x * x, axis=1, keepdims=True)), 1e-12)
    ref = (x / norm) @ weight.T + bias
    assert jnp.allclose(out, ref, atol=1e-5, rtol=1e-5)

    print("KERNEL_OK")
</pallas_src>

<mosaic_0001>
module attributes {stable_mosaic.version = 11 : i64} {
  func.func @_normalize_linear_kernel(%arg0: i32, %arg1: memref<8x32xf32, #tpu.memory_space<vmem>>, %arg2: memref<32x32xf32, #tpu.memory_space<vmem>>, %arg3: memref<1x32xf32, #tpu.memory_space<vmem>>, %arg4: memref<8x32xf32, #tpu.memory_space<vmem>>) attributes {dimension_semantics = [#tpu.dimension_semantics<parallel>], iteration_bounds = array<i64: 1>, scalar_prefetch = 0 : i64, scratch_operands = 0 : i64, tpu.core_type = #tpu.core_type<tc>, window_params = [{transform_indices = @transform_0, window_bounds = array<i64: 8, 32>}, {pipeline_mode = #tpu.pipeline_mode<synchronous>, transform_indices = @transform_1, window_bounds = array<i64: 32, 32>}, {pipeline_mode = #tpu.pipeline_mode<synchronous>, transform_indices = @transform_2, window_bounds = array<i64: 1, 32>}, {transform_indices = @transform_3, window_bounds = array<i64: 8, 32>}]} {
    %c0 = arith.constant 0 : index
    %c0_0 = arith.constant 0 : index
    %0 = vector.load %arg1[%c0, %c0_0] : memref<8x32xf32, #tpu.memory_space<vmem>>, vector<8x32xf32>
    %1 = arith.mulf %0, %0 : vector<8x32xf32>
    %cst = arith.constant dense<0.000000e+00> : vector<8xf32>
    %2 = vector.multi_reduction <add>, %1, %cst [1] : vector<8x32xf32> to vector<8xf32>
    %3 = vector.shape_cast %2 : vector<8xf32> to vector<8x1xf32>
    %cst_1 = arith.constant 1.000000e-24 : f32
    %4 = vector.broadcast %cst_1 : f32 to vector<8x1xf32>
    %5 = arith.maximumf %3, %4 : vector<8x1xf32>
    %6 = math.rsqrt %5 : vector<8x1xf32>
    %7 = vector.broadcast %6 : vector<8x1xf32> to vector<8x32xf32>
    %8 = arith.mulf %0, %7 : vector<8x32xf32>
    %c0_2 = arith.constant 0 : index
    %c0_3 = arith.constant 0 : index
    %9 = vector.load %arg2[%c0_2, %c0_3] : memref<32x32xf32, #tpu.memory_space<vmem>>, vector<32x32xf32>
    %cst_4 = arith.constant dense<0.000000e+00> : vector<8x32xf32>
    %10 = tpu.matmul %8, %9, %cst_4 {dimension_numbers = #tpu.dot_dimension_numbers<[1], [1], [0], [0], [0, 0, 1, 0], [], []>} : vector<8x32xf32>, vector<32x32xf32>, vector<8x32xf32> -> vector<8x32xf32>
    %c0_5 = arith.constant 0 : index
    %c0_6 = arith.constant 0 : index
    %11 = vector.load %arg3[%c0_5, %c0_6] : memref<1x32xf32, #tpu.memory_space<vmem>>, vector<1x32xf32>
    %12 = vector.broadcast %11 : vector<1x32xf32> to vector<8x32xf32>
    %13 = arith.addf %10, %12 : vector<8x32xf32>
    %c0_7 = arith.constant 0 : index
    %c0_8 = arith.constant 0 : index
    %14 = vector.load %arg4[%c0_7, %c0_8] : memref<8x32xf32, #tpu.memory_space<vmem>>, vector<8x32xf32>
    tpu.vector_store %arg4[%c0_7, %c0_8], %13 {strides = array<i32>} : memref<8x32xf32, #tpu.memory_space<vmem>>, vector<8x32xf32>,
    return
  }
  func.func @transform_0(%arg0: i32) -> (i32, i32) {
    %c0_i32 = arith.constant 0 : i32
    %c0_i32_0 = arith.constant 0 : i32
    return %arg0, %c0_i32 : i32, i32
  }
  func.func @transform_1(%arg0: i32) -> (i32, i32) {
    %c0_i32 = arith.constant 0 : i32
    %c0_i32_0 = arith.constant 0 : i32
    %c0_i32_1 = arith.constant 0 : i32
    return %c0_i32, %c0_i32_0 : i32, i32
  }
  func.func @transform_2(%arg0: i32) -> (i32, i32) {
    %c0_i32 = arith.constant 0 : i32
    %c0_i32_0 = arith.constant 0 : i32
    %c0_i32_1 = arith.constant 0 : i32
    return %c0_i32, %c0_i32_0 : i32, i32
  }
  func.func @transform_3(%arg0: i32) -> (i32, i32) {
    %c0_i32 = arith.constant 0 : i32
    %c0_i32_0 = arith.constant 0 : i32
    return %arg0, %c0_i32 : i32, i32
  }
}

</mosaic_0001>

<llo_original>
// kernel: tpu_custom_call.1
$region0: #{tpu_custom_call.1}
  #allocation0 [shape = 'u32[]', space=smem, size = 0x4, offset = 0x4, fixed_abs, tag = 'smem constant byte address 0x4 - core index']
  #allocation1 [shape = 'u32[144,128]{1,0:T(1,128)}', space=vmem, size = 0x12000, scoped, tag = 'internal scratch']
  %s0 = inlined_call_operand.hbm [shape: f32[8,32], index: 0, kind: input, shape index: {}]
  %s1 = inlined_call_operand.hbm [shape: f32[32,32], index: 1, kind: input, shape index: {}]
  %s2 = inlined_call_operand.vmem [shape: f32[1,32], index: 2, kind: input, shape index: {}]
  %s3 = inlined_call_operand.hbm [shape: f32[8,32], index: 3, kind: output, shape index: {}]
  %s4 = sld [smem:[#allocation0]]
  $region30: #{tpu_custom_call.1} parent=0
    _
  %s6 = ssub.s32 1, %s4
  %s7 = scalar_select 0, %s6, %s4
  $region1: #{tpu_custom_call.1} parent=0
    #allocation2 [shape = 'u8[4096]{0}', space=vmem, size = 0x1000, scoped, tag = 'input window, operand 0, single buffered']
    #allocation3 [shape = 's32[1]{0}', space=sflag, size = 0x4, scoped, tag = 'scoped memory for tpu_custom_call.1']
    #allocation4 [shape = 's32[1]{0}', space=sflag, size = 0x4, scoped, tag = 'scoped memory for tpu_custom_call.1']
    #allocation5 [shape = 'u8[16384]{0}', space=vmem, size = 0x4000, scoped, tag = 'input window, operand 1, single buffered']
    #allocation6 [shape = 's32[1]{0}', space=sflag, size = 0x4, scoped, tag = 'scoped memory for tpu_custom_call.1']
    #allocation7 [shape = 'u8[4096]{0}', space=vmem, size = 0x1000, scoped, tag = 'output window, operand 0, single buffered']
    %8 = vsyncpa [#allocation3], 0
    %9 = vsyncpa [#allocation6], 0
    %10 = vsyncpa [#allocation4], 0
    // Predicated region
    $region2: #{tpu_custom_call.1} parent=1 // pred_check
      _
    $region3: #{tpu_custom_call.1} parent=1 // pred_check_branch
      %12 = sbr.rel (0) target = $region5
    $region4: #{tpu_custom_call.1} parent=1 // pred_region
      %s14 = ssub.s32 128, 128
      %15 = vsyncadd [#allocation3], %s14
      %s17 = sshll.u32 [#allocation2], 4
      %s18 = int_to_ptr.vmem [resolvable:$true] %s17
      %20 = dma.hbm_to_vmem [thread:$0]  %s0, 128, %s18, [#allocation3]
    $region5: #{tpu_custom_call.1} parent=1 // pred_fallthru
      _
    // Predicated region
    $region6: #{tpu_custom_call.1} parent=1 // pred_check
      _
    $region7: #{tpu_custom_call.1} parent=1 // pred_check_branch
      %22 = sbr.rel (0) target = $region9
    $region8: #{tpu_custom_call.1} parent=1 // pred_region
      %s24 = ssub.s32 512, 512
      %25 = vsyncadd [#allocation6], %s24
      %s26 = sshll.u32 [#allocation5], 4
      %s27 = int_to_ptr.vmem [resolvable:$true] %s26
      %32 = dma.hbm_to_vmem [thread:$0]  %s1, 512, %s27, [#allocation6], 128, 128, 8
    $region9: #{tpu_custom_call.1} parent=1 // pred_fallthru
      _
    // Predicated region
    $region10: #{tpu_custom_call.1} parent=1 // pred_check
      _
    $region11: #{tpu_custom_call.1} parent=1 // pred_check_branch
      %34 = sbr.rel (0) target = $region13
    $region12: #{tpu_custom_call.1} parent=1 // pred_region
      _
    $region13: #{tpu_custom_call.1} parent=1 // pred_fallthru
      _
    // Predicated region
    $region14: #{tpu_custom_call.1} parent=1 // pred_check
      _
    $region15: #{tpu_custom_call.1} parent=1 // pred_check_branch
      %36 = sbr.rel (0) target = $region17
    $region16: #{tpu_custom_call.1} parent=1 // pred_region
      %37 = dma.done [#allocation3], 128
    $region17: #{tpu_custom_call.1} parent=1 // pred_fallthru
      _
    // Predicated region
    $region18: #{tpu_custom_call.1} parent=1 // pred_check
      _
    $region19: #{tpu_custom_call.1} parent=1 // pred_check_branch
      %39 = sbr.rel (0) target = $region21
    $region20: #{tpu_custom_call.1} parent=1 // pred_region
      %40 = dma.done [#allocation6], 512
    $region21: #{tpu_custom_call.1} parent=1 // pred_fallthru
      _
    %v41 = vld [vmem:[#allocation2] sm:$0xff]
    %v42 = vmul.f32 %v41, %v41
    %vm43 = vcmask 261120
    %v44 = vsel %vm43, %v42, 0.0
    %45 = vadd.xlane.f32.xlu0 %v44
    %v46 = vpop.xlane.xlu0 %45
    %v47 = vmax.f32 %v46, 1e-24
    %v48 = vrsqrt.pop %v47
    %v49 = vmul.f32 %v41, %v48
    %v50 = vld [vmem:[#allocation5] sm:$0xff]
    %v51 = vld [vmem:[#allocation5 + $0x8] sm:$0xff]
    %v52 = vld [vmem:[#allocation5 + $0x10] sm:$0xff]
    %v53 = vld [vmem:[#allocation5 + $0x18] sm:$0xff]
    %v54 = vld [vmem:[%s2] sm:$0x1]
    %v56 = vlaneseq
    %v57 = vshrl.u32 %v56, 7
    %v58 = vsub.s32 0, %v57
    %v59 = vrot.slane %v54, %v58
    %v62 = vsel %vm43, %v49, 0
    %v65 = vsel %vm43, %v50, 0
    %v68 = vsel %vm43, %v51, 0
    %v71 = vsel %vm43, %v52, 0
    %v74 = vsel %vm43, %v53, 0
    %76 = vmatprep.subr.mxu0 0.0
    %77 = vmatpush1.xpose.msra.mxu0 %v65
    %78 = vmatprep.subr.mxu0 0.0
    %79 = vmatpush1.xpose.msra.mxu0 %v68
    %80 = vmatprep.subr.mxu0 0.0
    %81 = vmatpush1.xpose.msra.mxu0 %v71
    %82 = vmatprep.subr.mxu0 0.0
    %83 = vmatpush1.xpose.msra.mxu0 %v74
    %84 = vmatprep.subr.mxu0 0.0
    %85 = vmatpush1.xpose.msra.mxu0 0.0
    %86 = vmatprep.subr.mxu0 0.0
    %87 = vmatpush1.xpose.msra.mxu0 0.0
    %88 = vmatprep.subr.mxu0 0.0
    %89 = vmatpush1.xpose.msra.mxu0 0.0
    %90 = vmatprep.subr.mxu0 0.0
    %91 = vmatpush1.xpose.msra.mxu0 0.0
    %92 = vmatprep.subr.mxu0 0.0
    %93 = vmatpush1.xpose.msra.mxu0 0.0
    %94 = vmatprep.subr.mxu0 0.0
    %95 = vmatpush1.xpose.msra.mxu0 0.0
    %96 = vmatprep.subr.mxu0 0.0
    %97 = vmatpush1.xpose.msra.mxu0 0.0
    %98 = vmatprep.subr.mxu0 0.0
    %99 = vmatpush1.xpose.msra.mxu0 0.0
    %100 = vmatprep.subr.mxu0 0.0
    %101 = vmatpush1.xpose.msra.mxu0 0.0
    %102 = vmatprep.subr.mxu0 0.0
    %103 = vmatpush1.xpose.msra.mxu0 0.0
    %104 = vmatprep.subr.mxu0 0.0
    %105 = vmatpush1.xpose.msra.mxu0 0.0
    %106 = vmatprep.subr.mxu0 0.0
    %107 = vmatpush1.xpose.msra.mxu0 0.0
    %108 = vmatprep.subr.mxu0 0.0
    %109 = vmatpush1.xpose.msra.mxu0 0.0
    %110 = vmatprep.subr.mxu0 0.0
    %111 = vmatpush1.xpose.msra.mxu0 0.0
    %112 = vmatprep.subr.mxu0 0.0
    %113 = vmatpush1.xpose.msra.mxu0 0.0
    %114 = vmatprep.subr.mxu0 0.0
    %115 = vmatpush1.xpose.msra.mxu0 0.0
    %116 = vmatprep.subr.mxu0 0.0
    %117 = vmatpush1.xpose.msra.mxu0 0.0
    %118 = vmatprep.subr.mxu0 0.0
    %119 = vmatpush1.xpose.msra.mxu0 0.0
    %120 = vmatprep.subr.mxu0 0.0
    %121 = vmatpush1.xpose.msra.mxu0 0.0
    %122 = vmatprep.subr.mxu0 0.0
    %123 = vmatpush1.xpose.msra.mxu0 0.0
    %124 = vmatprep.subr.mxu0 0.0
    %125 = vmatpush1.xpose.msra.mxu0 0.0
    %126 = vmatprep.subr.mxu0 0.0
    %127 = vmatpush1.xpose.msra.mxu0 0.0
    %128 = vmatprep.subr.mxu0 0.0
    %129 = vmatpush1.xpose.msra.mxu0 0.0
    %130 = vmatprep.subr.mxu0 0.0
    %131 = vmatpush1.xpose.msra.mxu0 0.0
    %132 = vmatprep.subr.mxu0 0.0
    %133 = vmatpush1.xpose.msra.mxu0 0.0
    %134 = vmatprep.subr.mxu0 0.0
    %135 = vmatpush1.xpose.msra.mxu0 0.0
    %136 = vmatprep.subr.mxu0 0.0
    %137 = vmatpush1.xpose.msra.mxu0 0.0
    %138 = vmatprep.subr.mxu0 0.0
    %139 = vmatpush1.xpose.msra.mxu0 0.0
    %140 = vmatprep.mubr.f32.mxu0 0.0
    %141 = vmatmul.mubr.f32.gmra.mrb[0].mxu0 %v62
    %v142 = vpop.f32.mrb[0].mxu0
    %v143 = vadd.f32 %v59, %v142
    %v144 = vpop.f32.mrb[0].mxu0
    %145 = vdwg.mxu0
    %146 = vst.msk [vmem:[#allocation7] sm:$0xff] %vm43, %v143
    // Predicated region
    $region22: #{tpu_custom_call.1} parent=1 // pred_check
      _
    $region23: #{tpu_custom_call.1} parent=1 // pred_check_branch
      %148 = sbr.rel (0) target = $region25
    $region24: #{tpu_custom_call.1} parent=1 // pred_region
      %s150 = ssub.s32 128, 128
      %151 = vsyncadd [#allocation4], %s150
      %s153 = sshll.u32 [#allocation7], 4
      %s154 = int_to_ptr.vmem [resolvable:$true] %s153
      %156 = dma.vmem_to_hbm [thread:$0]  %s154, 128, %s3, [#allocation4]
    $region25: #{tpu_custom_call.1} parent=1 // pred_fallthru
      _
    // Predicated region
    $region26: #{tpu_custom_call.1} parent=1 // pred_check
      _
    $region27: #{tpu_custom_call.1} parent=1 // pred_check_branch
      %158 = sbr.rel (0) target = $region29
    $region28: #{tpu_custom_call.1} parent=1 // pred_region
      %159 = dma.done [#allocation4], 128
    $region29: #{tpu_custom_call.1} parent=1 // pred_fallthru
      _
    %160 = vsyncpa [#allocation3], 1
    %161 = vsyncpa [#allocation6], 1
    %162 = vsyncpa [#allocation4], 1

</llo_original>
